<compile_context>
chip_gen: v5e
topology: v5e:2x2
jax: 0.10.0
libtpu: 0.0.40
codegen_flags: <defaults>
</compile_context>

<pallas_src>
import jax
import jax.numpy as jnp
from jax.experimental import pallas as pl
from jax.experimental.pallas import tpu as pltpu


def _meta_controller_kernel(x_ref, w1_ref, b1_ref, w2_ref, b2_ref, o_ref):
    # fc1: bf16 x bf16 -> f32 accumulate, exact f32 bias add, ReLU.
    x = x_ref[...].astype(w1_ref.dtype)
    h = jnp.dot(x, w1_ref[...], preferred_element_type=jnp.float32) + b1_ref[...]
    h = jnp.maximum(h, 0.0)
    # fc2 -> lane-dense (padded-to-128) f32 output + exact f32 bias add.
    o_ref[...] = (
        jnp.dot(h.astype(w2_ref.dtype), w2_ref[...],
                preferred_element_type=jnp.float32) + b2_ref[...])


def _round_up(n, m):
    return ((n + m - 1) // m) * m


def _num_tensorcores():
    """Best-effort TensorCore count of the local device (heuristic)."""
    try:
        d = jax.devices()[0]
        kind = str(getattr(d, "device_kind", "")).lower()
        if "v7" in kind:
            return 2
        nc = getattr(d, "num_cores", None)
        if isinstance(nc, int) and nc > 0:
            return nc
    except Exception:
        pass
    return 1


def _choose_block_b(B, cores, block_b=None):
    """Return batch tile size, or None for the no-grid single-block path."""
    if block_b is not None:
        return block_b if B > block_b else None
    if cores <= 1:
        # Single TC: a grid only adds ~0.35us/step overhead; everything fits
        # VMEM easily up to a few thousand rows (~2 KiB activations/row).
        return None if B <= 4096 else 1024
    # Multi-core: shard the batch across cores with as few parallel steps as
    # possible; keep the M tile a multiple of 256 (fills the MXU rows).
    if B < 512:
        return None
    return min(_round_up(-(-B // cores), 256), 2048)


def pack_params(w1, b1, w2, b2, compute_dtype=jnp.bfloat16):
    """Pack once: weights in bf16 for the MXU, biases exact f32, fc2 padded to
    128 output lanes so the kernel's store is a full unmasked lane-dense vst."""
    in_f, hidden = w1.shape
    out_f = w2.shape[-1]
    n_pad = _round_up(out_f, 128)

    w1_p = w1.astype(compute_dtype)                                # (6, 256)
    b1_p = jnp.reshape(b1.astype(jnp.float32), (1, hidden))        # (1, 256)
    w2_p = jnp.zeros((hidden, n_pad), compute_dtype).at[:, :out_f].set(
        w2.astype(compute_dtype))                                  # (256, 128)
    b2_p = jnp.zeros((1, n_pad), jnp.float32).at[0, :out_f].set(
        jnp.ravel(b2).astype(jnp.float32))                         # (1, 128)
    return w1_p, b1_p, w2_p, b2_p, out_f


def make_meta_controller(w1, b1, w2, b2, *, compute_dtype=jnp.bfloat16,
                         block_b=None, return_padded=False):
    """Pack parameters once and return a jitted forward(x) closure.

    x: [B, in_features] -> [B, out_features] (or [B, 128] if return_padded).
    """
    w1_p, b1_p, w2_p, b2_p, out_f = pack_params(w1, b1, w2, b2, compute_dtype)
    in_f, hidden = w1.shape
    n_pad = w2_p.shape[1]
    cores = _num_tensorcores()

    def _forward(x):
        B = x.shape[0]
        x = x.astype(jnp.float32)
        blk = _choose_block_b(B, cores, block_b)

        if blk is None:
            # No grid / no pipelining: every operand is one full-extent VMEM block.
            vmem = pl.BlockSpec(memory_space=pltpu.MemorySpace.VMEM)
            out_padded = pl.pallas_call(
                _meta_controller_kernel,
                out_shape=jax.ShapeDtypeStruct((B, n_pad), jnp.float32),
                in_specs=[vmem, vmem, vmem, vmem, vmem],
                out_specs=vmem,
            )(x, w1_p, b1_p, w2_p, b2_p)
        else:
            b_pad = _round_up(B, blk)
            if b_pad != B:
                x = jnp.zeros((b_pad, in_f), jnp.float32).at[:B].set(x)
            out_padded = pl.pallas_call(
                _meta_controller_kernel,
                out_shape=jax.ShapeDtypeStruct((b_pad, n_pad), jnp.float32),
                grid=(b_pad // blk,),
                in_specs=[
                    pl.BlockSpec((blk, in_f), lambda i: (i, 0)),
                    pl.BlockSpec((in_f, hidden), lambda i: (0, 0)),
                    pl.BlockSpec((1, hidden), lambda i: (0, 0)),
                    pl.BlockSpec((hidden, n_pad), lambda i: (0, 0)),
                    pl.BlockSpec((1, n_pad), lambda i: (0, 0)),
                ],
                out_specs=pl.BlockSpec((blk, n_pad), lambda i: (i, 0)),
                compiler_params=pltpu.CompilerParams(
                    dimension_semantics=("parallel",)),
            )(x, w1_p, b1_p, w2_p, b2_p)
            out_padded = out_padded[:B]

        if return_padded:
            return out_padded
        # Slice happens inside the same jit, so it fuses with the consumer.
        return out_padded[:, :out_f]

    return jax.jit(_forward)


def init_params(key, in_features=6, hidden=256, out_features=6, dtype=jnp.float32):
    """Mimics PyTorch nn.Linear default init (U[-1/sqrt(fan_in), +1/sqrt(fan_in)]).
    Weights are stored already transposed to [in, out]."""
    k1, k2, k3, k4 = jax.random.split(key, 4)
    bound1 = 1.0 / jnp.sqrt(in_features)
    bound2 = 1.0 / jnp.sqrt(hidden)
    w1 = jax.random.uniform(k1, (in_features, hidden), dtype, -bound1, bound1)
    b1 = jax.random.uniform(k2, (hidden,), dtype, -bound1, bound1)
    w2 = jax.random.uniform(k3, (hidden, out_features), dtype, -bound2, bound2)
    b2 = jax.random.uniform(k4, (out_features,), dtype, -bound2, bound2)
    return w1, b1, w2, b2


if __name__ == "__main__":
    key = jax.random.PRNGKey(0)
    kx, kb, kp = jax.random.split(key, 3)

    in_features, out_features = 6, 6
    w1, b1, w2, b2 = init_params(kp, in_features, 256, out_features)

    def reference(x):
        return jnp.maximum(x @ w1 + b1, 0.0) @ w2 + b2

    # Default (auto path choice): pack once, jitted forward closure.
    forward = make_meta_controller(w1, b1, w2, b2)

    # Tiny batch -> no-grid single-VMEM-block path on all chips.
    x_small = jax.random.normal(kx, (8, in_features), jnp.float32)
    out_small = forward(x_small)
    jax.block_until_ready(out_small)
    assert out_small.shape == (8, out_features)
    # bf16 matmul inputs with f32 accumulation -> relaxed tolerance.
    assert jnp.allclose(out_small, reference(x_small), atol=3e-2, rtol=3e-2)

    # Larger batch with an explicit block size to exercise the batch-tiled,
    # "parallel" grid path (2 steps at block_b=1024 -> one per v7x TensorCore).
    forward_grid = make_meta_controller(w1, b1, w2, b2, block_b=1024)
    x_big = jax.random.normal(kb, (2048, in_features), jnp.float32)
    out_big = forward_grid(x_big)
    jax.block_until_ready(out_big)
    assert out_big.shape == (2048, out_features)
    assert jnp.allclose(out_big, reference(x_big), atol=3e-2, rtol=3e-2)

    # Same batch through the auto path (no-grid on 1-TC chips, grid on v7x).
    out_auto = forward(x_big)
    jax.block_until_ready(out_auto)
    assert out_auto.shape == (2048, out_features)
    assert jnp.allclose(out_auto, reference(x_big), atol=3e-2, rtol=3e-2)

    print("KERNEL_OK")
</pallas_src>

<mosaic_0001>
module attributes {stable_mosaic.version = 11 : i64} {
  func.func @_meta_controller_kernel(%arg0: memref<8x6xf32, #tpu.memory_space<vmem>>, %arg1: memref<6x256xbf16, #tpu.memory_space<vmem>>, %arg2: memref<1x256xf32, #tpu.memory_space<vmem>>, %arg3: memref<256x128xbf16, #tpu.memory_space<vmem>>, %arg4: memref<1x128xf32, #tpu.memory_space<vmem>>, %arg5: memref<8x128xf32, #tpu.memory_space<vmem>>) attributes {dimension_semantics = [], scalar_prefetch = 0 : i64, scratch_operands = 0 : i64, tpu.core_type = #tpu.core_type<tc>} {
    %c0 = arith.constant 0 : index
    %c0_0 = arith.constant 0 : index
    %0 = vector.load %arg0[%c0, %c0_0] : memref<8x6xf32, #tpu.memory_space<vmem>>, vector<8x6xf32>
    %1 = arith.truncf %0 : vector<8x6xf32> to vector<8x6xbf16>
    %c0_1 = arith.constant 0 : index
    %c0_2 = arith.constant 0 : index
    %2 = vector.load %arg1[%c0_1, %c0_2] : memref<6x256xbf16, #tpu.memory_space<vmem>>, vector<6x256xbf16>
    %cst = arith.constant dense<0.000000e+00> : vector<8x256xf32>
    %3 = tpu.matmul %1, %2, %cst {dimension_numbers = #tpu.dot_dimension_numbers<[1], [0], [0], [1], [0, 0, 1, 1], [], []>} : vector<8x6xbf16>, vector<6x256xbf16>, vector<8x256xf32> -> vector<8x256xf32>
    %c0_3 = arith.constant 0 : index
    %c0_4 = arith.constant 0 : index
    %4 = vector.load %arg2[%c0_3, %c0_4] : memref<1x256xf32, #tpu.memory_space<vmem>>, vector<1x256xf32>
    %5 = vector.broadcast %4 : vector<1x256xf32> to vector<8x256xf32>
    %6 = arith.addf %3, %5 : vector<8x256xf32>
    %cst_5 = arith.constant 0.000000e+00 : f32
    %7 = vector.broadcast %cst_5 : f32 to vector<8x256xf32>
    %8 = arith.maximumf %6, %7 : vector<8x256xf32>
    %9 = arith.truncf %8 : vector<8x256xf32> to vector<8x256xbf16>
    %c0_6 = arith.constant 0 : index
    %c0_7 = arith.constant 0 : index
    %10 = vector.load %arg3[%c0_6, %c0_7] : memref<256x128xbf16, #tpu.memory_space<vmem>>, vector<256x128xbf16>
    %cst_8 = arith.constant dense<0.000000e+00> : vector<8x128xf32>
    %11 = tpu.matmul %9, %10, %cst_8 {dimension_numbers = #tpu.dot_dimension_numbers<[1], [0], [0], [1], [0, 0, 1, 1], [], []>} : vector<8x256xbf16>, vector<256x128xbf16>, vector<8x128xf32> -> vector<8x128xf32>
    %c0_9 = arith.constant 0 : index
    %c0_10 = arith.constant 0 : index
    %12 = vector.load %arg4[%c0_9, %c0_10] : memref<1x128xf32, #tpu.memory_space<vmem>>, vector<1x128xf32>
    %13 = vector.broadcast %12 : vector<1x128xf32> to vector<8x128xf32>
    %14 = arith.addf %11, %13 : vector<8x128xf32>
    %c0_11 = arith.constant 0 : index
    %c0_12 = arith.constant 0 : index
    %15 = vector.load %arg5[%c0_11, %c0_12] : memref<8x128xf32, #tpu.memory_space<vmem>>, vector<8x128xf32>
    tpu.vector_store %arg5[%c0_11, %c0_12], %14 {strides = array<i32>} : memref<8x128xf32, #tpu.memory_space<vmem>>, vector<8x128xf32>,
    return
  }
}

</mosaic_0001>

<llo_original>
// kernel: _forward.1
$region0: #{_forward.1}
  #allocation0 [shape = 'u32[]', space=smem, size = 0x4, offset = 0x4, fixed_abs, tag = 'smem constant byte address 0x4 - core index']
  #allocation1 [shape = 'u32[72,128]{1,0:T(1,128)}', space=vmem, size = 0x9000, scoped, tag = 'internal scratch']
  %s0 = inlined_call_operand.hbm [shape: f32[8,6], index: 0, kind: input, shape index: {}]
  %s1 = inlined_call_operand.hbm [shape: bf16[6,256], index: 1, kind: input, shape index: {}]
  %s2 = inlined_call_operand.hbm [shape: f32[1,256], index: 2, kind: input, shape index: {}]
  %s3 = inlined_call_operand.hbm [shape: bf16[256,128], index: 3, kind: input, shape index: {}]
  %s4 = inlined_call_operand.vmem [shape: f32[1,128], index: 4, kind: input, shape index: {}]
  %s5 = inlined_call_operand.hbm [shape: f32[8,128], index: 5, kind: output, shape index: {}]
  %s6 = sld [smem:[#allocation0]]
  $region46: #{_forward.1} parent=0
    _
  %s8 = ssub.s32 1, %s6
  %s9 = scalar_select 0, %s8, %s6
  $region1: #{_forward.1} parent=0
    #allocation2 [shape = 'u8[4096]{0}', space=vmem, size = 0x1000, scoped, tag = 'input window, operand 0, single buffered']
    #allocation3 [shape = 's32[1]{0}', space=sflag, size = 0x4, scoped, tag = 'scoped memory for _forward.1']
    #allocation4 [shape = 's32[1]{0}', space=sflag, size = 0x4, scoped, tag = 'scoped memory for _forward.1']
    #allocation5 [shape = 'u8[4096]{0}', space=vmem, size = 0x1000, scoped, tag = 'input window, operand 1, single buffered']
    #allocation6 [shape = 's32[1]{0}', space=sflag, size = 0x4, scoped, tag = 'scoped memory for _forward.1']
    #allocation7 [shape = 'u8[1024]{0}', space=vmem, size = 0x400, scoped, tag = 'input window, operand 2, single buffered']
    #allocation8 [shape = 'u8[65536]{0}', space=vmem, size = 0x10000, scoped, tag = 'input window, operand 3, single buffered']
    #allocation9 [shape = 's32[1]{0}', space=sflag, size = 0x4, scoped, tag = 'scoped memory for _forward.1']
    #allocation10 [shape = 'u8[4096]{0}', space=vmem, size = 0x1000, scoped, tag = 'output window, operand 0, single buffered']
    %10 = vsyncpa [#allocation3], 0
    %11 = vsyncpa [#allocation6], 0
    %12 = vsyncpa [#allocation9], 0
    %13 = vsyncpa [#allocation4], 0
    // Predicated region
    $region2: #{_forward.1} parent=1 // pred_check
      _
    $region3: #{_forward.1} parent=1 // pred_check_branch
      %15 = sbr.rel (0) target = $region5
    $region4: #{_forward.1} parent=1 // pred_region
      %17 = vsyncadd [#allocation3], 0
      %s19 = sshll.u32 %s0, 4
      %s20 = int_to_ptr.hbm [resolvable:$true] %s19
      %s21 = sshll.u32 [#allocation2], 4
      %s22 = int_to_ptr.vmem [resolvable:$true] %s21
      %24 = dma.hbm_to_vmem [thread:$0]  %s20, 128, %s22, [#allocation3]
    $region5: #{_forward.1} parent=1 // pred_fallthru
      _
    // Predicated region
    $region6: #{_forward.1} parent=1 // pred_check
      _
    $region7: #{_forward.1} parent=1 // pred_check_branch
      %26 = sbr.rel (0) target = $region9
    $region8: #{_forward.1} parent=1 // pred_region
      %28 = vsyncadd [#allocation6], 0
      %s30 = sshll.u32 %s1, 4
      %s31 = int_to_ptr.hbm [resolvable:$true] %s30
      %s32 = sshll.u32 [#allocation5], 4
      %s33 = int_to_ptr.vmem [resolvable:$true] %s32
      %35 = dma.hbm_to_vmem [thread:$0]  %s31, 128, %s33, [#allocation6]
    $region9: #{_forward.1} parent=1 // pred_fallthru
      _
    // Predicated region
    $region10: #{_forward.1} parent=1 // pred_check
      _
    $region11: #{_forward.1} parent=1 // pred_check_branch
      %37 = sbr.rel (0) target = $region13
    $region12: #{_forward.1} parent=1 // pred_region
      %39 = vsyncadd [#allocation6], 0
      %s41 = sshll.u32 %s2, 4
      %s42 = int_to_ptr.hbm [resolvable:$true] %s41
      %s43 = sshll.u32 [#allocation7], 4
      %s44 = int_to_ptr.vmem [resolvable:$true] %s43
      %46 = dma.hbm_to_vmem [thread:$0]  %s42, 32, %s44, [#allocation6]
    $region13: #{_forward.1} parent=1 // pred_fallthru
      _
    // Predicated region
    $region14: #{_forward.1} parent=1 // pred_check
      _
    $region15: #{_forward.1} parent=1 // pred_check_branch
      %48 = sbr.rel (0) target = $region17
    $region16: #{_forward.1} parent=1 // pred_region
      %50 = vsyncadd [#allocation9], 0
      %s51 = sshll.u32 %s3, 4
      %s52 = int_to_ptr.hbm [resolvable:$true] %s51
      %s53 = sshll.u32 [#allocation8], 4
      %s54 = int_to_ptr.vmem [resolvable:$true] %s53
      %59 = dma.hbm_to_vmem [thread:$0]  %s52, 2048, %s54, [#allocation9], 64, 64, 4
    $region17: #{_forward.1} parent=1 // pred_fallthru
      _
    // Predicated region
    $region18: #{_forward.1} parent=1 // pred_check
      _
    $region19: #{_forward.1} parent=1 // pred_check_branch
      %61 = sbr.rel (0) target = $region21
    $region20: #{_forward.1} parent=1 // pred_region
      _
    $region21: #{_forward.1} parent=1 // pred_fallthru
      _
    // Predicated region
    $region22: #{_forward.1} parent=1 // pred_check
      _
    $region23: #{_forward.1} parent=1 // pred_check_branch
      %63 = sbr.rel (0) target = $region25
    $region24: #{_forward.1} parent=1 // pred_region
      %65 = dma.done [#allocation3], 128
    $region25: #{_forward.1} parent=1 // pred_fallthru
      _
    // Predicated region
    $region26: #{_forward.1} parent=1 // pred_check
      _
    $region27: #{_forward.1} parent=1 // pred_check_branch
      %67 = sbr.rel (0) target = $region29
    $region28: #{_forward.1} parent=1 // pred_region
      %69 = dma.done [#allocation6], 128
    $region29: #{_forward.1} parent=1 // pred_fallthru
      _
    // Predicated region
    $region30: #{_forward.1} parent=1 // pred_check
      _
    $region31: #{_forward.1} parent=1 // pred_check_branch
      %71 = sbr.rel (0) target = $region33
    $region32: #{_forward.1} parent=1 // pred_region
      %73 = dma.done [#allocation6], 32
    $region33: #{_forward.1} parent=1 // pred_fallthru
      _
    // Predicated region
    $region34: #{_forward.1} parent=1 // pred_check
      _
    $region35: #{_forward.1} parent=1 // pred_check_branch
      %75 = sbr.rel (0) target = $region37
    $region36: #{_forward.1} parent=1 // pred_region
      %77 = dma.done [#allocation9], 2048
    $region37: #{_forward.1} parent=1 // pred_fallthru
      _
    %v79 = vld [vmem:[#allocation2] sm:$0xff]
    %v80 = vpack.c.bf16 %v79, %v79
    %v81 = vld [vmem:[#allocation5] sm:$0x77]
    %v82 = vld [vmem:[#allocation7] sm:$0x3]
    %v84 = vperm.slane %v82, 0
    %v85 = vperm.slane %v82, 1
    %v89 = vunpack.c.l.b16 %v81
    %v90 = vunpack.c.h.b16 %v81
    %v91 = vpack.c.b16 %v89, %v89
    %v92 = vpack.c.b16 %v90, %v90
    %vm93 = vcmask 48128
    %v95 = vsel %vm93, %v80, 0
    %vm97 = vcmask 1042432
    %v99 = vsel %vm97, %v91, 0
    %v102 = vsel %vm97, %v92, 0
    %104 = vmatpush.bf16.msra.mxu0 0
    %105 = vmatpush.bf16.msra.mxu0 0
    %106 = vmatpush.bf16.msra.mxu0 0
    %107 = vmatpush.bf16.msra.mxu0 0
    %108 = vmatpush.bf16.msra.mxu0 0
    %109 = vmatpush.bf16.msra.mxu0 0
    %110 = vmatpush.bf16.msra.mxu0 0
    %111 = vmatpush.bf16.msra.mxu0 %v99
    %112 = vmatmul.bf16.gmra.mxu0 %v95
    %v113 = vpop.f32.mrf.mxu0
    %v114 = vadd.f32 %v84, %v113
    %v115 = vpop.f32.mrf.mxu0
    %116 = vdwg.mxu0
    %117 = vmatpush.bf16.msra.mxu0 0
    %118 = vmatpush.bf16.msra.mxu0 0
    %119 = vmatpush.bf16.msra.mxu0 0
    %120 = vmatpush.bf16.msra.mxu0 0
    %121 = vmatpush.bf16.msra.mxu0 0
    %122 = vmatpush.bf16.msra.mxu0 0
    %123 = vmatpush.bf16.msra.mxu0 0
    %124 = vmatpush.bf16.msra.mxu0 %v102
    %125 = vmatmul.bf16.gmra.mxu0 %v95
    %v126 = vpop.f32.mrf.mxu0
    %v127 = vadd.f32 %v85, %v126
    %v128 = vpop.f32.mrf.mxu0
    %129 = vdwg.mxu0
    %v130 = vmax.f32 %v114, 0.0
    %v131 = vmax.f32 %v127, 0.0
    %v132 = vpack.c.bf16 %v130, %v130
    %v133 = vpack.c.bf16 %v131, %v131
    %v134 = vld [vmem:[#allocation8] sm:$0xf]
    %v135 = vld [vmem:[#allocation8 + $0x4] sm:$0xf]
    %v136 = vld [vmem:[#allocation8 + $0x8] sm:$0xf]
    %v137 = vld [vmem:[#allocation8 + $0xc] sm:$0xf]
    %v138 = vld [vmem:[#allocation8 + $0x10] sm:$0xf]
    %v139 = vld [vmem:[#allocation8 + $0x14] sm:$0xf]
    %v140 = vld [vmem:[#allocation8 + $0x18] sm:$0xf]
    %v141 = vld [vmem:[#allocation8 + $0x1c] sm:$0xf]
    %v142 = vld [vmem:[#allocation8 + $0x20] sm:$0xf]
    %v143 = vld [vmem:[#allocation8 + $0x24] sm:$0xf]
    %v144 = vld [vmem:[#allocation8 + $0x28] sm:$0xf]
    %v145 = vld [vmem:[#allocation8 + $0x2c] sm:$0xf]
    %v146 = vld [vmem:[#allocation8 + $0x30] sm:$0xf]
    %v147 = vld [vmem:[#allocation8 + $0x34] sm:$0xf]
    %v148 = vld [vmem:[#allocation8 + $0x38] sm:$0xf]
    %v149 = vld [vmem:[#allocation8 + $0x3c] sm:$0xf]
    %v150 = vld [vmem:[#allocation8 + $0x40] sm:$0xf]
    %v151 = vld [vmem:[#allocation8 + $0x44] sm:$0xf]
    %v152 = vld [vmem:[#allocation8 + $0x48] sm:$0xf]
    %v153 = vld [vmem:[#allocation8 + $0x4c] sm:$0xf]
    %v154 = vld [vmem:[#allocation8 + $0x50] sm:$0xf]
    %v155 = vld [vmem:[#allocation8 + $0x54] sm:$0xf]
    %v156 = vld [vmem:[#allocation8 + $0x58] sm:$0xf]
    %v157 = vld [vmem:[#allocation8 + $0x5c] sm:$0xf]
    %v158 = vld [vmem:[#allocation8 + $0x60] sm:$0xf]
    %v159 = vld [vmem:[#allocation8 + $0x64] sm:$0xf]
    %v160 = vld [vmem:[#allocation8 + $0x68] sm:$0xf]
    %v161 = vld [vmem:[#allocation8 + $0x6c] sm:$0xf]
    %v162 = vld [vmem:[#allocation8 + $0x70] sm:$0xf]
    %v163 = vld [vmem:[#allocation8 + $0x74] sm:$0xf]
    %v164 = vld [vmem:[#allocation8 + $0x78] sm:$0xf]
    %v165 = vld [vmem:[#allocation8 + $0x7c] sm:$0xf]
    %v166 = vld [vmem:[%s4] sm:$0x1]
    %v168 = vperm.slane %v166, 0
    %v202 = vunpack.c.l.b16 %v134
    %v203 = vunpack.c.l.b16 %v135
    %v204 = vunpack.c.l.b16 %v136
    %v205 = vunpack.c.l.b16 %v137
    %v206 = vunpack.c.l.b16 %v138
    %v207 = vunpack.c.l.b16 %v139
    %v208 = vunpack.c.l.b16 %v140
    %v209 = vunpack.c.l.b16 %v141
    %v210 = vunpack.c.l.b16 %v142
    %v211 = vunpack.c.l.b16 %v143
    %v212 = vunpack.c.l.b16 %v144
    %v213 = vunpack.c.l.b16 %v145
    %v214 = vunpack.c.l.b16 %v146
    %v215 = vunpack.c.l.b16 %v147
    %v216 = vunpack.c.l.b16 %v148
    %v217 = vunpack.c.l.b16 %v149
    %v218 = vunpack.c.l.b16 %v150
    %v219 = vunpack.c.l.b16 %v151
    %v220 = vunpack.c.l.b16 %v152
    %v221 = vunpack.c.l.b16 %v153
    %v222 = vunpack.c.l.b16 %v154
    %v223 = vunpack.c.l.b16 %v155
    %v224 = vunpack.c.l.b16 %v156
    %v225 = vunpack.c.l.b16 %v157
    %v226 = vunpack.c.l.b16 %v158
    %v227 = vunpack.c.l.b16 %v159
    %v228 = vunpack.c.l.b16 %v160
    %v229 = vunpack.c.l.b16 %v161
    %v230 = vunpack.c.l.b16 %v162
    %v231 = vunpack.c.l.b16 %v163
    %v232 = vunpack.c.l.b16 %v164
    %v233 = vunpack.c.l.b16 %v165
    %v234 = vpack.c.b16 %v203, %v202
    %v235 = vpack.c.b16 %v205, %v204
    %v236 = vpack.c.b16 %v207, %v206
    %v237 = vpack.c.b16 %v209, %v208
    %v238 = vpack.c.b16 %v211, %v210
    %v239 = vpack.c.b16 %v213, %v212
    %v240 = vpack.c.b16 %v215, %v214
    %v241 = vpack.c.b16 %v217, %v216
    %v242 = vpack.c.b16 %v219, %v218
    %v243 = vpack.c.b16 %v221, %v220
    %v244 = vpack.c.b16 %v223, %v222
    %v245 = vpack.c.b16 %v225, %v224
    %v246 = vpack.c.b16 %v227, %v226
    %v247 = vpack.c.b16 %v229, %v228
    %v248 = vpack.c.b16 %v231, %v230
    %v249 = vpack.c.b16 %v233, %v232
    %266 = vmatpush.bf16.msra.mxu0 %v241
    %267 = vmatpush.bf16.msra.mxu0 %v240
    %268 = vmatpush.bf16.msra.mxu0 %v239
    %269 = vmatpush.bf16.msra.mxu0 %v238
    %270 = vmatpush.bf16.msra.mxu0 %v237
    %271 = vmatpush.bf16.msra.mxu0 %v236
    %272 = vmatpush.bf16.msra.mxu0 %v235
    %273 = vmatpush.bf16.msra.mxu0 %v234
    %274 = vmatmul.bf16.gmra.mxu0 %v132
    %v275 = vpop.f32.mrf.mxu0
    %v276 = vadd.f32 %v168, %v275
    %v277 = vpop.f32.mrf.mxu0
    %278 = vdwg.mxu0
    %279 = vmatpush.bf16.msra.mxu0 %v249
    %280 = vmatpush.bf16.msra.mxu0 %v248
    %281 = vmatpush.bf16.msra.mxu0 %v247
    %282 = vmatpush.bf16.msra.mxu0 %v246
    %283 = vmatpush.bf16.msra.mxu0 %v245
    %284 = vmatpush.bf16.msra.mxu0 %v244
    %285 = vmatpush.bf16.msra.mxu0 %v243
    %286 = vmatpush.bf16.msra.mxu0 %v242
    %287 = vmatmul.bf16.gmra.mxu0 %v133
    %v288 = vpop.f32.mrf.mxu0
    %v289 = vadd.f32 %v276, %v288
    %v290 = vpop.f32.mrf.mxu0
    %291 = vdwg.mxu0
    %292 = vst [vmem:[#allocation10] sm:$0xff] %v289
    // Predicated region
    $region38: #{_forward.1} parent=1 // pred_check
      _
    $region39: #{_forward.1} parent=1 // pred_check_branch
      %294 = sbr.rel (0) target = $region41
    $region40: #{_forward.1} parent=1 // pred_region
      %296 = vsyncadd [#allocation4], 0
      %s298 = sshll.u32 [#allocation10], 4
      %s299 = int_to_ptr.vmem [resolvable:$true] %s298
      %s300 = sshll.u32 %s5, 4
      %s301 = int_to_ptr.hbm [resolvable:$true] %s300
      %303 = dma.vmem_to_hbm [thread:$0]  %s299, 128, %s301, [#allocation4]
    $region41: #{_forward.1} parent=1 // pred_fallthru
      _
    // Predicated region
    $region42: #{_forward.1} parent=1 // pred_check
      _
    $region43: #{_forward.1} parent=1 // pred_check_branch
      %305 = sbr.rel (0) target = $region45
    $region44: #{_forward.1} parent=1 // pred_region
      %307 = dma.done [#allocation4], 128
    $region45: #{_forward.1} parent=1 // pred_fallthru
      _
    %308 = vsyncpa [#allocation3], 1
    %309 = vsyncpa [#allocation6], 1
    %310 = vsyncpa [#allocation9], 1
    %311 = vsyncpa [#allocation4], 1

</llo_original>
